<compile_context>
chip_gen: v7x
topology: tpu7x:2x2x1
jax: 0.10.0
libtpu: 0.0.40
codegen_flags: <defaults>
</compile_context>

<pallas_src>
import functools

import jax
import jax.numpy as jnp
from jax.experimental import pallas as pl
from jax.experimental.pallas import tpu as pltpu

_EPS = 1e-5
_VMEM_LIMIT = 32 * 1024 * 1024   # safe on every generation incl. v7x (64 MiB physical)
_PACK = 8                        # batch rows packed into one MXU row (block-diag weights)
_GPAD = 16                       # lanes per feature group (15/10 padded to 16); 8*16 = 128


def _cdiv(a, b):
    return -(-a // b)


def _round_up(a, b):
    return _cdiv(a, b) * b


def _elu(x):
    # PyTorch ELU(alpha=1): x if x > 0 else exp(x) - 1.
    # (exp(x)-1 kept instead of expm1 for guaranteed Mosaic lowering; the
    #  difference is ~1e-7 absolute, far below the reference tolerance.)
    return jnp.where(x > 0, x, jnp.exp(jnp.minimum(x, 0.0)) - 1.0)


# -----------------------------------------------------------------------------
# Kernels
# -----------------------------------------------------------------------------
def _linear_elu_stats_kernel(x_ref, w_ref, b_ref, h_ref, stats_ref, *, n, p, gpad):
    """h = ELU(x @ W + b) on the packed layout; emit per-tile BN partial stats.

    stats_ref is a (16, 128) per-tile output block:
      rows 0:8  = masked partial column sums     (one partial per sublane)
      rows 8:16 = masked partial column sum-of-squares
    The batch mask and the partial reduction run on the VPU (idle VALU slots,
    hidden under the matmul), so the MXU only ever sees the resident weight.
    """
    i = pl.program_id(0)
    tpb, pf = h_ref.shape

    h = jnp.dot(x_ref[...], w_ref[...], preferred_element_type=jnp.float32)
    h = _elu(h + b_ref[...])
    h_ref[...] = h                                     # lane-dense (128-wide) store

    # Row-validity mask: packed row r, lane-group g = lane // gpad holds the
    # original batch row (i*tpb + r)*p + g.  Padded rows are excluded.
    r = jax.lax.broadcasted_iota(jnp.int32, (tpb, pf), 0)
    lane = jax.lax.broadcasted_iota(jnp.int32, (tpb, pf), 1)
    g = jnp.right_shift(lane, gpad.bit_length() - 1)   # lane // gpad (gpad = power of 2)
    valid = ((i * tpb + r) * p + g) < n
    hm = jnp.where(valid, h, 0.0)

    # Partial reduce to (8, pf) with plain VALU adds over sublane groups; the
    # final 8-sublane / cross-tile / cross-group reduce happens in _bn_fold.
    hr = hm.reshape(tpb // 8, 8, pf)
    stats_ref[0:8, :] = jnp.sum(hr, axis=0)
    stats_ref[8:16, :] = jnp.sum(hr * hr, axis=0)


def _linear_kernel(x_ref, w_ref, b_ref, o_ref):
    """out = x @ W + b on the packed layout (BN already folded into W/b)."""
    o = jnp.dot(x_ref[...], w_ref[...], preferred_element_type=jnp.float32)
    o_ref[...] = (o + b_ref[...]).astype(o_ref.dtype)


# -----------------------------------------------------------------------------
# pallas_call wrappers
# -----------------------------------------------------------------------------
def _linear_elu_stats(x, w, b, n_true, p, gpad, tpb):
    n_rows, kin = x.shape
    pf = w.shape[1]
    nt = n_rows // tpb

    cost = pl.CostEstimate(
        flops=int(2 * n_rows * kin * pf + 12 * n_rows * pf),
        transcendentals=int(n_rows * pf),
        bytes_accessed=int(4 * (n_rows * (kin + pf) + kin * pf + pf + nt * 16 * pf)),
    )

    return pl.pallas_call(
        functools.partial(_linear_elu_stats_kernel, n=n_true, p=p, gpad=gpad),
        grid=(nt,),
        in_specs=[
            pl.BlockSpec((tpb, kin), lambda i: (i, 0)),
            pl.BlockSpec((kin, pf), lambda i: (0, 0)),   # resident weight (staged once)
            pl.BlockSpec((1, pf), lambda i: (0, 0)),     # resident bias
        ],
        out_specs=(
            pl.BlockSpec((tpb, pf), lambda i: (i, 0)),   # packed activations
            pl.BlockSpec((16, pf), lambda i: (i, 0)),    # per-tile partial stats
        ),
        out_shape=(
            jax.ShapeDtypeStruct((n_rows, pf), jnp.float32),
            jax.ShapeDtypeStruct((nt * 16, pf), jnp.float32),
        ),
        compiler_params=pltpu.CompilerParams(
            dimension_semantics=("parallel",),           # independent tiles -> megacore
            vmem_limit_bytes=_VMEM_LIMIT,
        ),
        cost_estimate=cost,
    )(x, w, b)


def _linear(x, w, b, tpb):
    n_rows, kin = x.shape
    pf = w.shape[1]
    nt = n_rows // tpb

    cost = pl.CostEstimate(
        flops=int(2 * n_rows * kin * pf),
        transcendentals=0,
        bytes_accessed=int(4 * (n_rows * (kin + pf) + kin * pf + pf)),
    )

    return pl.pallas_call(
        _linear_kernel,
        grid=(nt,),
        in_specs=[
            pl.BlockSpec((tpb, kin), lambda i: (i, 0)),
            pl.BlockSpec((kin, pf), lambda i: (0, 0)),
            pl.BlockSpec((1, pf), lambda i: (0, 0)),
        ],
        out_specs=pl.BlockSpec((tpb, pf), lambda i: (i, 0)),
        out_shape=jax.ShapeDtypeStruct((n_rows, pf), jnp.float32),
        compiler_params=pltpu.CompilerParams(
            dimension_semantics=("parallel",),
            vmem_limit_bytes=_VMEM_LIMIT,
        ),
        cost_estimate=cost,
    )(x, w, b)


# -----------------------------------------------------------------------------
# Packing helpers + BN fold (tiny, plain XLA)
# -----------------------------------------------------------------------------
def _pack_weights(w, b, p, gin, gout):
    """Block-diagonal weight / tiled bias for the batch-packed layout.

    Each of the p groups occupies `gin` input lanes and `gout` output lanes;
    unused (padding) rows/columns stay exactly zero.
    """
    fin, fout = w.shape
    wp = jnp.zeros((p * gin, p * gout), jnp.float32)
    bp = jnp.zeros((1, p * gout), jnp.float32)
    for g in range(p):
        wp = wp.at[g * gin:g * gin + fin, g * gout:g * gout + fout].set(w)
        bp = bp.at[:, g * gout:g * gout + fout].set(b)
    return wp, bp


def _bn_fold(stats, n_true, gamma, beta, w_next, b_next, p, f, gpad, eps=_EPS):
    """Fold BatchNorm (train mode, biased var) into the following Linear.

    ((h - mu) * s + beta) @ W + b  ==  h @ (diag(s) W) + ((beta - mu*s) @ W + b)
    with s = gamma * rsqrt(var + eps).  `stats` is (nt*16, p*gpad) per-tile
    partials: rows [0:8) of each 16-row block are sums, rows [8:16) sums of
    squares.  Everything here is tiny (<= a few KiB).
    """
    pf = stats.shape[-1]
    st = stats.reshape(-1, 2, 8, pf).sum(axis=(0, 2))            # (2, p*gpad)
    per_feat = st.reshape(2, p, gpad)[:, :, :f].sum(axis=1)      # (2, f), drop lane pad
    inv_n = 1.0 / float(n_true)
    mean = (per_feat[0] * inv_n)[None, :]                        # (1, f)
    var = jnp.maximum(per_feat[1][None, :] * inv_n - mean * mean, 0.0)
    scale = gamma * jax.lax.rsqrt(var + eps)                     # (1, f)
    w_folded = w_next * jnp.reshape(scale, (-1, 1))
    b_folded = b_next + (beta - mean * scale) @ w_next
    return w_folded, b_folded


# -----------------------------------------------------------------------------
# Forward pass
# -----------------------------------------------------------------------------
def mlp_forward(x, params, tb=4096):
    """tb = target original batch rows per grid tile (rounded internally)."""
    (w1, b1, g1, be1, w2, b2, g2, be2, w3, b3) = params
    n, fin = x.shape
    p, gpad = _PACK, _GPAD

    # Packed rows per tile: multiple of 8 (sublane constraint), >= 8.
    tpb = max(8, _round_up(_cdiv(min(tb, max(n, 1)), p), 8))
    n_pad = _round_up(n, p * tpb)

    x = x.astype(jnp.float32)
    if n_pad != n:
        x = jnp.pad(x, ((0, n_pad - n), (0, 0)))
    xp = x.reshape(n_pad // p, p * fin)                      # (N/8, 560), contiguous

    # Pass 1: packed Linear(70,15) + ELU, per-tile BN1 partial statistics.
    w1p, b1p = _pack_weights(w1, b1, p, fin, gpad)           # (560,128), (1,128)
    h1, stats1 = _linear_elu_stats(xp, w1p, b1p, n, p, gpad, tpb)
    w2f, b2f = _bn_fold(stats1, n, g1, be1, w2, b2, p, 15, gpad)

    # Pass 2: (BN1 folded) packed Linear(15,10) + ELU, BN2 partial statistics.
    w2p, b2p = _pack_weights(w2f, b2f, p, gpad, gpad)        # (128,128)
    h2, stats2 = _linear_elu_stats(h1, w2p, b2p, n, p, gpad, tpb)
    w3f, b3f = _bn_fold(stats2, n, g2, be2, w3, b3, p, 10, gpad)

    # Pass 3: (BN2 folded) packed Linear(10,10).
    w3p, b3p = _pack_weights(w3f, b3f, p, gpad, gpad)        # (128,128)
    outp = _linear(h2, w3p, b3p, tpb)                        # (N/8, 128)

    # Unpack: contiguous reshape, then drop lane padding and batch padding.
    return outp.reshape(n_pad, gpad)[:n, :10]


# -----------------------------------------------------------------------------
# Parameters + pure-JAX reference
# -----------------------------------------------------------------------------
def init_params(key):
    ks = jax.random.split(key, 6)

    def linear(kw, kb, fan_in, fan_out):
        bound = 1.0 / jnp.sqrt(fan_in)
        w = jax.random.uniform(kw, (fan_in, fan_out), jnp.float32, -bound, bound)
        b = jax.random.uniform(kb, (1, fan_out), jnp.float32, -bound, bound)
        return w, b

    w1, b1 = linear(ks[0], ks[1], 70, 15)
    w2, b2 = linear(ks[2], ks[3], 15, 10)
    w3, b3 = linear(ks[4], ks[5], 10, 10)

    g1 = jnp.ones((1, 15), jnp.float32)
    be1 = jnp.zeros((1, 15), jnp.float32)
    g2 = jnp.ones((1, 10), jnp.float32)
    be2 = jnp.zeros((1, 10), jnp.float32)

    return (w1, b1, g1, be1, w2, b2, g2, be2, w3, b3)


def _batchnorm_train(h, gamma, beta, eps=_EPS):
    mean = jnp.mean(h, axis=0, keepdims=True)
    var = jnp.mean((h - mean) ** 2, axis=0, keepdims=True)
    return (h - mean) * jax.lax.rsqrt(var + eps) * gamma + beta


def _reference(x, params):
    (w1, b1, g1, be1, w2, b2, g2, be2, w3, b3) = params
    h = _elu(x @ w1 + b1)
    h = _batchnorm_train(h, g1, be1)
    h = _elu(h @ w2 + b2)
    h = _batchnorm_train(h, g2, be2)
    return h @ w3 + b3


if __name__ == "__main__":
    key = jax.random.PRNGKey(0)
    kx, kp = jax.random.split(key)
    params = init_params(kp)

    fwd = jax.jit(mlp_forward)

    # Small single-tile check (n_pad=64: exercises within-packed-row masking).
    batch = 8
    x = jax.random.normal(kx, (batch, 70), jnp.float32)
    out = jax.block_until_ready(fwd(x, params))
    ref = _reference(x, params)
    assert out.shape == (batch, 10)
    assert jnp.allclose(out, ref, atol=1e-3, rtol=1e-3), "mismatch vs reference (N=8)"

    # Multi-tile check with padding/masking (tpb=16 -> 3 tiles of 128 rows, 84 pad rows).
    x2 = jax.random.normal(jax.random.fold_in(kx, 1), (300, 70), jnp.float32)
    out2 = jax.block_until_ready(mlp_forward(x2, params, tb=128))
    ref2 = _reference(x2, params)
    assert out2.shape == (300, 10)
    assert jnp.allclose(out2, ref2, atol=1e-3, rtol=1e-3), "mismatch vs reference (N=300)"

    print("KERNEL_OK")
</pallas_src>

<mosaic_0001>
module attributes {stable_mosaic.version = 11 : i64} {
  func.func @_linear_elu_stats_kernel(%arg0: i32, %arg1: memref<8x560xf32, #tpu.memory_space<vmem>>, %arg2: memref<560x128xf32, #tpu.memory_space<vmem>>, %arg3: memref<1x128xf32, #tpu.memory_space<vmem>>, %arg4: memref<8x128xf32, #tpu.memory_space<vmem>>, %arg5: memref<16x128xf32, #tpu.memory_space<vmem>>) attributes {dimension_semantics = [#tpu.dimension_semantics<parallel>], iteration_bounds = array<i64: 1>, scalar_prefetch = 0 : i64, scratch_operands = 0 : i64, tpu.core_type = #tpu.core_type<tc>, window_params = [{transform_indices = @transform_0, window_bounds = array<i64: 8, 560>}, {pipeline_mode = #tpu.pipeline_mode<synchronous>, transform_indices = @transform_1, window_bounds = array<i64: 560, 128>}, {pipeline_mode = #tpu.pipeline_mode<synchronous>, transform_indices = @transform_2, window_bounds = array<i64: 1, 128>}, {transform_indices = @transform_3, window_bounds = array<i64: 8, 128>}, {transform_indices = @transform_4, window_bounds = array<i64: 16, 128>}]} {
    %c0 = arith.constant 0 : index
    %c0_0 = arith.constant 0 : index
    %0 = vector.load %arg1[%c0, %c0_0] : memref<8x560xf32, #tpu.memory_space<vmem>>, vector<8x560xf32>
    %c0_1 = arith.constant 0 : index
    %c0_2 = arith.constant 0 : index
    %1 = vector.load %arg2[%c0_1, %c0_2] : memref<560x128xf32, #tpu.memory_space<vmem>>, vector<560x128xf32>
    %cst = arith.constant dense<0.000000e+00> : vector<8x128xf32>
    %2 = tpu.matmul %0, %1, %cst {dimension_numbers = #tpu.dot_dimension_numbers<[1], [0], [0], [1], [0, 0, 1, 1], [], []>} : vector<8x560xf32>, vector<560x128xf32>, vector<8x128xf32> -> vector<8x128xf32>
    %c0_3 = arith.constant 0 : index
    %c0_4 = arith.constant 0 : index
    %3 = vector.load %arg3[%c0_3, %c0_4] : memref<1x128xf32, #tpu.memory_space<vmem>>, vector<1x128xf32>
    %4 = vector.broadcast %3 : vector<1x128xf32> to vector<8x128xf32>
    %5 = arith.addf %2, %4 : vector<8x128xf32>
    %cst_5 = arith.constant 0.000000e+00 : f32
    %6 = vector.broadcast %cst_5 : f32 to vector<8x128xf32>
    %7 = arith.cmpf ogt, %5, %6 : vector<8x128xf32>
    %cst_6 = arith.constant 0.000000e+00 : f32
    %8 = vector.broadcast %cst_6 : f32 to vector<8x128xf32>
    %9 = arith.minimumf %5, %8 : vector<8x128xf32>
    %10 = math.exp %9 : vector<8x128xf32>
    %cst_7 = arith.constant 1.000000e+00 : f32
    %11 = vector.broadcast %cst_7 : f32 to vector<8x128xf32>
    %12 = arith.subf %10, %11 : vector<8x128xf32>
    %13 = arith.select %7, %5, %12 : vector<8x128xi1>, vector<8x128xf32>
    %c0_8 = arith.constant 0 : index
    %c0_9 = arith.constant 0 : index
    %14 = vector.load %arg4[%c0_8, %c0_9] : memref<8x128xf32, #tpu.memory_space<vmem>>, vector<8x128xf32>
    tpu.vector_store %arg4[%c0_8, %c0_9], %13 {strides = array<i32>} : memref<8x128xf32, #tpu.memory_space<vmem>>, vector<8x128xf32>,
    %15 = tpu.iota {dimensions = array<i32: 0>} : vector<8x128xi32>
    %16 = tpu.iota {dimensions = array<i32: 1>} : vector<8x128xi32>
    %c4_i32 = arith.constant 4 : i32
    %17 = vector.broadcast %c4_i32 : i32 to vector<8x128xi32>
    %18 = arith.shrsi %16, %17 : vector<8x128xi32>
    %c8_i32 = arith.constant 8 : i32
    %19 = arith.muli %arg0, %c8_i32 : i32
    %20 = vector.broadcast %19 : i32 to vector<8x128xi32>
    %21 = arith.addi %20, %15 : vector<8x128xi32>
    %c8_i32_10 = arith.constant 8 : i32
    %22 = vector.broadcast %c8_i32_10 : i32 to vector<8x128xi32>
    %23 = arith.muli %21, %22 : vector<8x128xi32>
    %24 = arith.addi %23, %18 : vector<8x128xi32>
    %c8_i32_11 = arith.constant 8 : i32
    %25 = vector.broadcast %c8_i32_11 : i32 to vector<8x128xi32>
    %26 = arith.cmpi slt, %24, %25 : vector<8x128xi32>
    %cst_12 = arith.constant 0.000000e+00 : f32
    %27 = vector.broadcast %cst_12 : f32 to vector<8x128xf32>
    %28 = arith.select %26, %13, %27 : vector<8x128xi1>, vector<8x128xf32>
    %29 = vector.shape_cast %28 : vector<8x128xf32> to vector<1x8x128xf32>
    %cst_13 = arith.constant dense<0.000000e+00> : vector<8x128xf32>
    %30 = vector.multi_reduction <add>, %29, %cst_13 [0] : vector<1x8x128xf32> to vector<8x128xf32>
    %c0_14 = arith.constant 0 : index
    %c0_15 = arith.constant 0 : index
    %31 = vector.load %arg5[%c0_14, %c0_15] : memref<16x128xf32, #tpu.memory_space<vmem>>, vector<8x128xf32>
    tpu.vector_store %arg5[%c0_14, %c0_15], %30 {strides = array<i32>} : memref<16x128xf32, #tpu.memory_space<vmem>>, vector<8x128xf32>,
    %32 = arith.mulf %29, %29 : vector<1x8x128xf32>
    %cst_16 = arith.constant dense<0.000000e+00> : vector<8x128xf32>
    %33 = vector.multi_reduction <add>, %32, %cst_16 [0] : vector<1x8x128xf32> to vector<8x128xf32>
    %c8 = arith.constant 8 : index
    %c0_17 = arith.constant 0 : index
    %34 = vector.load %arg5[%c8, %c0_17] : memref<16x128xf32, #tpu.memory_space<vmem>>, vector<8x128xf32>
    tpu.vector_store %arg5[%c8, %c0_17], %33 {strides = array<i32>} : memref<16x128xf32, #tpu.memory_space<vmem>>, vector<8x128xf32>,
    return
  }
  func.func @transform_0(%arg0: i32) -> (i32, i32) {
    %c0_i32 = arith.constant 0 : i32
    %c0_i32_0 = arith.constant 0 : i32
    return %arg0, %c0_i32 : i32, i32
  }
  func.func @transform_1(%arg0: i32) -> (i32, i32) {
    %c0_i32 = arith.constant 0 : i32
    %c0_i32_0 = arith.constant 0 : i32
    %c0_i32_1 = arith.constant 0 : i32
    return %c0_i32, %c0_i32_0 : i32, i32
  }
  func.func @transform_2(%arg0: i32) -> (i32, i32) {
    %c0_i32 = arith.constant 0 : i32
    %c0_i32_0 = arith.constant 0 : i32
    %c0_i32_1 = arith.constant 0 : i32
    return %c0_i32, %c0_i32_0 : i32, i32
  }
  func.func @transform_3(%arg0: i32) -> (i32, i32) {
    %c0_i32 = arith.constant 0 : i32
    %c0_i32_0 = arith.constant 0 : i32
    return %arg0, %c0_i32 : i32, i32
  }
  func.func @transform_4(%arg0: i32) -> (i32, i32) {
    %c0_i32 = arith.constant 0 : i32
    %c0_i32_0 = arith.constant 0 : i32
    return %arg0, %c0_i32 : i32, i32
  }
}

module attributes {stable_mosaic.version = 11 : i64} {
  func.func @_linear_elu_stats_kernel(%arg0: i32, %arg1: memref<8x128xf32, #tpu.memory_space<vmem>>, %arg2: memref<128x128xf32, #tpu.memory_space<vmem>>, %arg3: memref<1x128xf32, #tpu.memory_space<vmem>>, %arg4: memref<8x128xf32, #tpu.memory_space<vmem>>, %arg5: memref<16x128xf32, #tpu.memory_space<vmem>>) attributes {dimension_semantics = [#tpu.dimension_semantics<parallel>], iteration_bounds = array<i64: 1>, scalar_prefetch = 0 : i64, scratch_operands = 0 : i64, tpu.core_type = #tpu.core_type<tc>, window_params = [{transform_indices = @transform_0, window_bounds = array<i64: 8, 128>}, {pipeline_mode = #tpu.pipeline_mode<synchronous>, transform_indices = @transform_1, window_bounds = array<i64: 128, 128>}, {pipeline_mode = #tpu.pipeline_mode<synchronous>, transform_indices = @transform_2, window_bounds = array<i64: 1, 128>}, {transform_indices = @transform_3, window_bounds = array<i64: 8, 128>}, {transform_indices = @transform_4, window_bounds = array<i64: 16, 128>}]} {
    %c0 = arith.constant 0 : index
    %c0_0 = arith.constant 0 : index
    %0 = vector.load %arg1[%c0, %c0_0] : memref<8x128xf32, #tpu.memory_space<vmem>>, vector<8x128xf32>
    %c0_1 = arith.constant 0 : index
    %c0_2 = arith.constant 0 : index
    %1 = vector.load %arg2[%c0_1, %c0_2] : memref<128x128xf32, #tpu.memory_space<vmem>>, vector<128x128xf32>
    %cst = arith.constant dense<0.000000e+00> : vector<8x128xf32>
    %2 = tpu.matmul %0, %1, %cst {dimension_numbers = #tpu.dot_dimension_numbers<[1], [0], [0], [1], [0, 0, 1, 1], [], []>} : vector<8x128xf32>, vector<128x128xf32>, vector<8x128xf32> -> vector<8x128xf32>
    %c0_3 = arith.constant 0 : index
    %c0_4 = arith.constant 0 : index
    %3 = vector.load %arg3[%c0_3, %c0_4] : memref<1x128xf32, #tpu.memory_space<vmem>>, vector<1x128xf32>
    %4 = vector.broadcast %3 : vector<1x128xf32> to vector<8x128xf32>
    %5 = arith.addf %2, %4 : vector<8x128xf32>
    %cst_5 = arith.constant 0.000000e+00 : f32
    %6 = vector.broadcast %cst_5 : f32 to vector<8x128xf32>
    %7 = arith.cmpf ogt, %5, %6 : vector<8x128xf32>
    %cst_6 = arith.constant 0.000000e+00 : f32
    %8 = vector.broadcast %cst_6 : f32 to vector<8x128xf32>
    %9 = arith.minimumf %5, %8 : vector<8x128xf32>
    %10 = math.exp %9 : vector<8x128xf32>
    %cst_7 = arith.constant 1.000000e+00 : f32
    %11 = vector.broadcast %cst_7 : f32 to vector<8x128xf32>
    %12 = arith.subf %10, %11 : vector<8x128xf32>
    %13 = arith.select %7, %5, %12 : vector<8x128xi1>, vector<8x128xf32>
    %c0_8 = arith.constant 0 : index
    %c0_9 = arith.constant 0 : index
    %14 = vector.load %arg4[%c0_8, %c0_9] : memref<8x128xf32, #tpu.memory_space<vmem>>, vector<8x128xf32>
    tpu.vector_store %arg4[%c0_8, %c0_9], %13 {strides = array<i32>} : memref<8x128xf32, #tpu.memory_space<vmem>>, vector<8x128xf32>,
    %15 = tpu.iota {dimensions = array<i32: 0>} : vector<8x128xi32>
    %16 = tpu.iota {dimensions = array<i32: 1>} : vector<8x128xi32>
    %c4_i32 = arith.constant 4 : i32
    %17 = vector.broadcast %c4_i32 : i32 to vector<8x128xi32>
    %18 = arith.shrsi %16, %17 : vector<8x128xi32>
    %c8_i32 = arith.constant 8 : i32
    %19 = arith.muli %arg0, %c8_i32 : i32
    %20 = vector.broadcast %19 : i32 to vector<8x128xi32>
    %21 = arith.addi %20, %15 : vector<8x128xi32>
    %c8_i32_10 = arith.constant 8 : i32
    %22 = vector.broadcast %c8_i32_10 : i32 to vector<8x128xi32>
    %23 = arith.muli %21, %22 : vector<8x128xi32>
    %24 = arith.addi %23, %18 : vector<8x128xi32>
    %c8_i32_11 = arith.constant 8 : i32
    %25 = vector.broadcast %c8_i32_11 : i32 to vector<8x128xi32>
    %26 = arith.cmpi slt, %24, %25 : vector<8x128xi32>
    %cst_12 = arith.constant 0.000000e+00 : f32
    %27 = vector.broadcast %cst_12 : f32 to vector<8x128xf32>
    %28 = arith.select %26, %13, %27 : vector<8x128xi1>, vector<8x128xf32>
    %29 = vector.shape_cast %28 : vector<8x128xf32> to vector<1x8x128xf32>
    %cst_13 = arith.constant dense<0.000000e+00> : vector<8x128xf32>
    %30 = vector.multi_reduction <add>, %29, %cst_13 [0] : vector<1x8x128xf32> to vector<8x128xf32>
    %c0_14 = arith.constant 0 : index
    %c0_15 = arith.constant 0 : index
    %31 = vector.load %arg5[%c0_14, %c0_15] : memref<16x128xf32, #tpu.memory_space<vmem>>, vector<8x128xf32>
    tpu.vector_store %arg5[%c0_14, %c0_15], %30 {strides = array<i32>} : memref<16x128xf32, #tpu.memory_space<vmem>>, vector<8x128xf32>,
    %32 = arith.mulf %29, %29 : vector<1x8x128xf32>
    %cst_16 = arith.constant dense<0.000000e+00> : vector<8x128xf32>
    %33 = vector.multi_reduction <add>, %32, %cst_16 [0] : vector<1x8x128xf32> to vector<8x128xf32>
    %c8 = arith.constant 8 : index
    %c0_17 = arith.constant 0 : index
    %34 = vector.load %arg5[%c8, %c0_17] : memref<16x128xf32, #tpu.memory_space<vmem>>, vector<8x128xf32>
    tpu.vector_store %arg5[%c8, %c0_17], %33 {strides = array<i32>} : memref<16x128xf32, #tpu.memory_space<vmem>>, vector<8x128xf32>,
    return
  }
  func.func @transform_0(%arg0: i32) -> (i32, i32) {
    %c0_i32 = arith.constant 0 : i32
    %c0_i32_0 = arith.constant 0 : i32
    return %arg0, %c0_i32 : i32, i32
  }
  func.func @transform_1(%arg0: i32) -> (i32, i32) {
    %c0_i32 = arith.constant 0 : i32
    %c0_i32_0 = arith.constant 0 : i32
    %c0_i32_1 = arith.constant 0 : i32
    return %c0_i32, %c0_i32_0 : i32, i32
  }
  func.func @transform_2(%arg0: i32) -> (i32, i32) {
    %c0_i32 = arith.constant 0 : i32
    %c0_i32_0 = arith.constant 0 : i32
    %c0_i32_1 = arith.constant 0 : i32
    return %c0_i32, %c0_i32_0 : i32, i32
  }
  func.func @transform_3(%arg0: i32) -> (i32, i32) {
    %c0_i32 = arith.constant 0 : i32
    %c0_i32_0 = arith.constant 0 : i32
    return %arg0, %c0_i32 : i32, i32
  }
  func.func @transform_4(%arg0: i32) -> (i32, i32) {
    %c0_i32 = arith.constant 0 : i32
    %c0_i32_0 = arith.constant 0 : i32
    return %arg0, %c0_i32 : i32, i32
  }
}

module attributes {stable_mosaic.version = 11 : i64} {
  func.func @_linear_kernel(%arg0: i32, %arg1: memref<8x128xf32, #tpu.memory_space<vmem>>, %arg2: memref<128x128xf32, #tpu.memory_space<vmem>>, %arg3: memref<1x128xf32, #tpu.memory_space<vmem>>, %arg4: memref<8x128xf32, #tpu.memory_space<vmem>>) attributes {dimension_semantics = [#tpu.dimension_semantics<parallel>], iteration_bounds = array<i64: 1>, scalar_prefetch = 0 : i64, scratch_operands = 0 : i64, tpu.core_type = #tpu.core_type<tc>, window_params = [{transform_indices = @transform_0, window_bounds = array<i64: 8, 128>}, {pipeline_mode = #tpu.pipeline_mode<synchronous>, transform_indices = @transform_1, window_bounds = array<i64: 128, 128>}, {pipeline_mode = #tpu.pipeline_mode<synchronous>, transform_indices = @transform_2, window_bounds = array<i64: 1, 128>}, {transform_indices = @transform_3, window_bounds = array<i64: 8, 128>}]} {
    %c0 = arith.constant 0 : index
    %c0_0 = arith.constant 0 : index
    %0 = vector.load %arg1[%c0, %c0_0] : memref<8x128xf32, #tpu.memory_space<vmem>>, vector<8x128xf32>
    %c0_1 = arith.constant 0 : index
    %c0_2 = arith.constant 0 : index
    %1 = vector.load %arg2[%c0_1, %c0_2] : memref<128x128xf32, #tpu.memory_space<vmem>>, vector<128x128xf32>
    %cst = arith.constant dense<0.000000e+00> : vector<8x128xf32>
    %2 = tpu.matmul %0, %1, %cst {dimension_numbers = #tpu.dot_dimension_numbers<[1], [0], [0], [1], [0, 0, 1, 1], [], []>} : vector<8x128xf32>, vector<128x128xf32>, vector<8x128xf32> -> vector<8x128xf32>
    %c0_3 = arith.constant 0 : index
    %c0_4 = arith.constant 0 : index
    %3 = vector.load %arg3[%c0_3, %c0_4] : memref<1x128xf32, #tpu.memory_space<vmem>>, vector<1x128xf32>
    %4 = vector.broadcast %3 : vector<1x128xf32> to vector<8x128xf32>
    %5 = arith.addf %2, %4 : vector<8x128xf32>
    %c0_5 = arith.constant 0 : index
    %c0_6 = arith.constant 0 : index
    %6 = vector.load %arg4[%c0_5, %c0_6] : memref<8x128xf32, #tpu.memory_space<vmem>>, vector<8x128xf32>
    tpu.vector_store %arg4[%c0_5, %c0_6], %5 {strides = array<i32>} : memref<8x128xf32, #tpu.memory_space<vmem>>, vector<8x128xf32>,
    return
  }
  func.func @transform_0(%arg0: i32) -> (i32, i32) {
    %c0_i32 = arith.constant 0 : i32
    %c0_i32_0 = arith.constant 0 : i32
    return %arg0, %c0_i32 : i32, i32
  }
  func.func @transform_1(%arg0: i32) -> (i32, i32) {
    %c0_i32 = arith.constant 0 : i32
    %c0_i32_0 = arith.constant 0 : i32
    %c0_i32_1 = arith.constant 0 : i32
    return %c0_i32, %c0_i32_0 : i32, i32
  }
  func.func @transform_2(%arg0: i32) -> (i32, i32) {
    %c0_i32 = arith.constant 0 : i32
    %c0_i32_0 = arith.constant 0 : i32
    %c0_i32_1 = arith.constant 0 : i32
    return %c0_i32, %c0_i32_0 : i32, i32
  }
  func.func @transform_3(%arg0: i32) -> (i32, i32) {
    %c0_i32 = arith.constant 0 : i32
    %c0_i32_0 = arith.constant 0 : i32
    return %arg0, %c0_i32 : i32, i32
  }
}

</mosaic_0001>

<llo_original>
// kernel: mlp_forward.3
$region0: #{mlp_forward.3}
  #allocation0 [shape = 'u32[]', space=smem, size = 0x4, offset = 0x4, fixed_abs, tag = 'smem constant byte address 0x4 - core index']
  #allocation1 [shape = 'u32[144,128]{1,0:T(1,128)}', space=vmem, size = 0x12000, scoped, tag = 'internal scratch']
  %s0 = inlined_call_operand.vmem [shape: f32[8,560], index: 0, kind: input, shape index: {}]
  %s1 = inlined_call_operand.vmem [shape: f32[560,128], index: 1, kind: input, shape index: {}]
  %s2 = inlined_call_operand.vmem [shape: f32[1,128], index: 2, kind: input, shape index: {}]
  %s3 = inlined_call_operand.vmem [shape: f32[8,128], index: 3, kind: output, shape index: {0}]
  %s4 = inlined_call_operand.vmem [shape: f32[16,128], index: 4, kind: output, shape index: {1}]
  %5 = xla_tuple %s3, %s4
  %s6 = sld [smem:[#allocation0]]
  $region30: #{mlp_forward.3} parent=0
    _
  %s8 = ssub.s32 1, %s6
  %s9 = scalar_select 0, %s8, %s6
  // Predicated region
  $region2: #{mlp_forward.3} parent=0 // pred_check
    _
  $region3: #{mlp_forward.3} parent=0 // pred_check_branch
    %11 = sbr.rel (0) target = $region5
  $region4: #{mlp_forward.3} parent=0 // pred_region
    _
  $region5: #{mlp_forward.3} parent=0 // pred_fallthru
    _
  // Predicated region
  $region6: #{mlp_forward.3} parent=0 // pred_check
    _
  $region7: #{mlp_forward.3} parent=0 // pred_check_branch
    %13 = sbr.rel (0) target = $region9
  $region8: #{mlp_forward.3} parent=0 // pred_region
    _
  $region9: #{mlp_forward.3} parent=0 // pred_fallthru
    _
  // Predicated region
  $region10: #{mlp_forward.3} parent=0 // pred_check
    _
  $region11: #{mlp_forward.3} parent=0 // pred_check_branch
    %15 = sbr.rel (0) target = $region13
  $region12: #{mlp_forward.3} parent=0 // pred_region
    _
  $region13: #{mlp_forward.3} parent=0 // pred_fallthru
    _
  %v16 = vld [vmem:[%s0] sm:$0xff]
  %v17 = vld [vmem:[%s0 + $0x8] sm:$0xff]
  %v18 = vld [vmem:[%s0 + $0x10] sm:$0xff]
  %v19 = vld [vmem:[%s0 + $0x18] sm:$0xff]
  %v20 = vld [vmem:[%s0 + $0x20] sm:$0xff]
  %v21 = vld [vmem:[%s1] sm:$0xff]
  %v22 = vld [vmem:[%s1 + $0x8] sm:$0xff]
  %v23 = vld [vmem:[%s1 + $0x10] sm:$0xff]
  %v24 = vld [vmem:[%s1 + $0x18] sm:$0xff]
  %v25 = vld [vmem:[%s1 + $0x20] sm:$0xff]
  %v26 = vld [vmem:[%s1 + $0x28] sm:$0xff]
  %v27 = vld [vmem:[%s1 + $0x30] sm:$0xff]
  %v28 = vld [vmem:[%s1 + $0x38] sm:$0xff]
  %v29 = vld [vmem:[%s1 + $0x40] sm:$0xff]
  %v30 = vld [vmem:[%s1 + $0x48] sm:$0xff]
  %v31 = vld [vmem:[%s1 + $0x50] sm:$0xff]
  %v32 = vld [vmem:[%s1 + $0x58] sm:$0xff]
  %v33 = vld [vmem:[%s1 + $0x60] sm:$0xff]
  %v34 = vld [vmem:[%s1 + $0x68] sm:$0xff]
  %v35 = vld [vmem:[%s1 + $0x70] sm:$0xff]
  %v36 = vld [vmem:[%s1 + $0x78] sm:$0xff]
  %v37 = vld [vmem:[%s1 + $0x80] sm:$0xff]
  %v38 = vld [vmem:[%s1 + $0x88] sm:$0xff]
  %v39 = vld [vmem:[%s1 + $0x90] sm:$0xff]
  %v40 = vld [vmem:[%s1 + $0x98] sm:$0xff]
  %v41 = vld [vmem:[%s1 + $0xa0] sm:$0xff]
  %v42 = vld [vmem:[%s1 + $0xa8] sm:$0xff]
  %v43 = vld [vmem:[%s1 + $0xb0] sm:$0xff]
  %v44 = vld [vmem:[%s1 + $0xb8] sm:$0xff]
  %v45 = vld [vmem:[%s1 + $0xc0] sm:$0xff]
  %v46 = vld [vmem:[%s1 + $0xc8] sm:$0xff]
  %v47 = vld [vmem:[%s1 + $0xd0] sm:$0xff]
  %v48 = vld [vmem:[%s1 + $0xd8] sm:$0xff]
  %v49 = vld [vmem:[%s1 + $0xe0] sm:$0xff]
  %v50 = vld [vmem:[%s1 + $0xe8] sm:$0xff]
  %v51 = vld [vmem:[%s1 + $0xf0] sm:$0xff]
  %v52 = vld [vmem:[%s1 + $0xf8] sm:$0xff]
  %v53 = vld [vmem:[%s1 + $0x100] sm:$0xff]
  %v54 = vld [vmem:[%s1 + $0x108] sm:$0xff]
  %v55 = vld [vmem:[%s1 + $0x110] sm:$0xff]
  %v56 = vld [vmem:[%s1 + $0x118] sm:$0xff]
  %v57 = vld [vmem:[%s1 + $0x120] sm:$0xff]
  %v58 = vld [vmem:[%s1 + $0x128] sm:$0xff]
  %v59 = vld [vmem:[%s1 + $0x130] sm:$0xff]
  %v60 = vld [vmem:[%s1 + $0x138] sm:$0xff]
  %v61 = vld [vmem:[%s1 + $0x140] sm:$0xff]
  %v62 = vld [vmem:[%s1 + $0x148] sm:$0xff]
  %v63 = vld [vmem:[%s1 + $0x150] sm:$0xff]
  %v64 = vld [vmem:[%s1 + $0x158] sm:$0xff]
  %v65 = vld [vmem:[%s1 + $0x160] sm:$0xff]
  %v66 = vld [vmem:[%s1 + $0x168] sm:$0xff]
  %v67 = vld [vmem:[%s1 + $0x170] sm:$0xff]
  %v68 = vld [vmem:[%s1 + $0x178] sm:$0xff]
  %v69 = vld [vmem:[%s1 + $0x180] sm:$0xff]
  %v70 = vld [vmem:[%s1 + $0x188] sm:$0xff]
  %v71 = vld [vmem:[%s1 + $0x190] sm:$0xff]
  %v72 = vld [vmem:[%s1 + $0x198] sm:$0xff]
  %v73 = vld [vmem:[%s1 + $0x1a0] sm:$0xff]
  %v74 = vld [vmem:[%s1 + $0x1a8] sm:$0xff]
  %v75 = vld [vmem:[%s1 + $0x1b0] sm:$0xff]
  %v76 = vld [vmem:[%s1 + $0x1b8] sm:$0xff]
  %v77 = vld [vmem:[%s1 + $0x1c0] sm:$0xff]
  %v78 = vld [vmem:[%s1 + $0x1c8] sm:$0xff]
  %v79 = vld [vmem:[%s1 + $0x1d0] sm:$0xff]
  %v80 = vld [vmem:[%s1 + $0x1d8] sm:$0xff]
  %v81 = vld [vmem:[%s1 + $0x1e0] sm:$0xff]
  %v82 = vld [vmem:[%s1 + $0x1e8] sm:$0xff]
  %v83 = vld [vmem:[%s1 + $0x1f0] sm:$0xff]
  %v84 = vld [vmem:[%s1 + $0x1f8] sm:$0xff]
  %v85 = vld [vmem:[%s1 + $0x200] sm:$0xff]
  %v86 = vld [vmem:[%s1 + $0x208] sm:$0xff]
  %v87 = vld [vmem:[%s1 + $0x210] sm:$0xff]
  %v88 = vld [vmem:[%s1 + $0x218] sm:$0xff]
  %v89 = vld [vmem:[%s1 + $0x220] sm:$0xff]
  %v90 = vld [vmem:[%s1 + $0x228] sm:$0xff]
  %v91 = vld [vmem:[%s2] sm:$0x1]
  %v93 = vlaneseq
  %v94 = vshrl.u32 %v93, 7
  %v95 = vsub.s32 0, %v94
  %v96 = vrot.slane %v91, %v95
  %vm98 = vcmask 392192
  %v100 = vsel %vm98, %v20, 0
  %102 = vmatprep.subr.mxu0 0.0
  %103 = vmatpush1.msra.mxu0 %v21
  %104 = vmatprep.subr.mxu0 0.0
  %105 = vmatpush1.msra.mxu0 %v22
  %106 = vmatprep.subr.mxu0 0.0
  %107 = vmatpush1.msra.mxu0 %v23
  %108 = vmatprep.subr.mxu0 0.0
  %109 = vmatpush1.msra.mxu0 %v24
  %110 = vmatprep.subr.mxu0 0.0
  %111 = vmatpush1.msra.mxu0 %v25
  %112 = vmatprep.subr.mxu0 0.0
  %113 = vmatpush1.msra.mxu0 %v26
  %114 = vmatprep.subr.mxu0 0.0
  %115 = vmatpush1.msra.mxu0 %v27
  %116 = vmatprep.subr.mxu0 0.0
  %117 = vmatpush1.msra.mxu0 %v28
  %118 = vmatprep.subr.mxu0 0.0
  %119 = vmatpush1.msra.mxu0 %v29
  %120 = vmatprep.subr.mxu0 0.0
  %121 = vmatpush1.msra.mxu0 %v30
  %122 = vmatprep.subr.mxu0 0.0
  %123 = vmatpush1.msra.mxu0 %v31
  %124 = vmatprep.subr.mxu0 0.0
  %125 = vmatpush1.msra.mxu0 %v32
  %126 = vmatprep.subr.mxu0 0.0
  %127 = vmatpush1.msra.mxu0 %v33
  %128 = vmatprep.subr.mxu0 0.0
  %129 = vmatpush1.msra.mxu0 %v34
  %130 = vmatprep.subr.mxu0 0.0
  %131 = vmatpush1.msra.mxu0 %v35
  %132 = vmatprep.subr.mxu0 0.0
  %133 = vmatpush1.msra.mxu0 %v36
  %134 = vmatprep.subr.mxu0 0.0
  %135 = vmatpush1.msra.mxu0 %v37
  %136 = vmatprep.subr.mxu0 0.0
  %137 = vmatpush1.msra.mxu0 %v38
  %138 = vmatprep.subr.mxu0 0.0
  %139 = vmatpush1.msra.mxu0 %v39
  %140 = vmatprep.subr.mxu0 0.0
  %141 = vmatpush1.msra.mxu0 %v40
  %142 = vmatprep.subr.mxu0 0.0
  %143 = vmatpush1.msra.mxu0 %v41
  %144 = vmatprep.subr.mxu0 0.0
  %145 = vmatpush1.msra.mxu0 %v42
  %146 = vmatprep.subr.mxu0 0.0
  %147 = vmatpush1.msra.mxu0 %v43
  %148 = vmatprep.subr.mxu0 0.0
  %149 = vmatpush1.msra.mxu0 %v44
  %150 = vmatprep.subr.mxu0 0.0
  %151 = vmatpush1.msra.mxu0 %v45
  %152 = vmatprep.subr.mxu0 0.0
  %153 = vmatpush1.msra.mxu0 %v46
  %154 = vmatprep.subr.mxu0 0.0
  %155 = vmatpush1.msra.mxu0 %v47
  %156 = vmatprep.subr.mxu0 0.0
  %157 = vmatpush1.msra.mxu0 %v48
  %158 = vmatprep.subr.mxu0 0.0
  %159 = vmatpush1.msra.mxu0 %v49
  %160 = vmatprep.subr.mxu0 0.0
  %161 = vmatpush1.msra.mxu0 %v50
  %162 = vmatprep.subr.mxu0 0.0
  %163 = vmatpush1.msra.mxu0 %v51
  %164 = vmatprep.subr.mxu0 0.0
  %165 = vmatpush1.msra.mxu0 %v52
  %166 = vmatprep.mubr.f32.mxu0 %v17
  %167 = vmatmul.mubr.f32.gmra.mrb[0].mxu0 %v16
  %v168 = vpop.f32.mrb[0].mxu0
  %v169 = vadd.f32 %v96, %v168
  %v170 = vpop.f32.mrb[0].mxu0
  %171 = vdwg.mxu0
  %172 = vmatprep.subr.mxu0 0.0
  %173 = vmatpush1.msra.mxu0 %v53
  %174 = vmatprep.subr.mxu0 0.0
  %175 = vmatpush1.msra.mxu0 %v54
  %176 = vmatprep.subr.mxu0 0.0
  %177 = vmatpush1.msra.mxu0 %v55
  %178 = vmatprep.subr.mxu0 0.0
  %179 = vmatpush1.msra.mxu0 %v56
  %180 = vmatprep.subr.mxu0 0.0
  %181 = vmatpush1.msra.mxu0 %v57
  %182 = vmatprep.subr.mxu0 0.0
  %183 = vmatpush1.msra.mxu0 %v58
  %184 = vmatprep.subr.mxu0 0.0
  %185 = vmatpush1.msra.mxu0 %v59
  %186 = vmatprep.subr.mxu0 0.0
  %187 = vmatpush1.msra.mxu0 %v60
  %188 = vmatprep.subr.mxu0 0.0
  %189 = vmatpush1.msra.mxu0 %v61
  %190 = vmatprep.subr.mxu0 0.0
  %191 = vmatpush1.msra.mxu0 %v62
  %192 = vmatprep.subr.mxu0 0.0
  %193 = vmatpush1.msra.mxu0 %v63
  %194 = vmatprep.subr.mxu0 0.0
  %195 = vmatpush1.msra.mxu0 %v64
  %196 = vmatprep.subr.mxu0 0.0
  %197 = vmatpush1.msra.mxu0 %v65
  %198 = vmatprep.subr.mxu0 0.0
  %199 = vmatpush1.msra.mxu0 %v66
  %200 = vmatprep.subr.mxu0 0.0
  %201 = vmatpush1.msra.mxu0 %v67
  %202 = vmatprep.subr.mxu0 0.0
  %203 = vmatpush1.msra.mxu0 %v68
  %204 = vmatprep.subr.mxu0 0.0
  %205 = vmatpush1.msra.mxu0 %v69
  %206 = vmatprep.subr.mxu0 0.0
  %207 = vmatpush1.msra.mxu0 %v70
  %208 = vmatprep.subr.mxu0 0.0
  %209 = vmatpush1.msra.mxu0 %v71
  %210 = vmatprep.subr.mxu0 0.0
  %211 = vmatpush1.msra.mxu0 %v72
  %212 = vmatprep.subr.mxu0 0.0
  %213 = vmatpush1.msra.mxu0 %v73
  %214 = vmatprep.subr.mxu0 0.0
  %215 = vmatpush1.msra.mxu0 %v74
  %216 = vmatprep.subr.mxu0 0.0
  %217 = vmatpush1.msra.mxu0 %v75
  %218 = vmatprep.subr.mxu0 0.0
  %219 = vmatpush1.msra.mxu0 %v76
  %220 = vmatprep.subr.mxu0 0.0
  %221 = vmatpush1.msra.mxu0 %v77
  %222 = vmatprep.subr.mxu0 0.0
  %223 = vmatpush1.msra.mxu0 %v78
  %224 = vmatprep.subr.mxu0 0.0
  %225 = vmatpush1.msra.mxu0 %v79
  %226 = vmatprep.subr.mxu0 0.0
  %227 = vmatpush1.msra.mxu0 %v80
  %228 = vmatprep.subr.mxu0 0.0
  %229 = vmatpush1.msra.mxu0 %v81
  %230 = vmatprep.subr.mxu0 0.0
  %231 = vmatpush1.msra.mxu0 %v82
  %232 = vmatprep.subr.mxu0 0.0
  %233 = vmatpush1.msra.mxu0 %v83
  %234 = vmatprep.subr.mxu0 0.0
  %235 = vmatpush1.msra.mxu0 %v84
  %236 = vmatprep.mubr.f32.mxu0 %v19
  %237 = vmatmul.mubr.f32.gmra.mrb[0].mxu0 %v18
  %v238 = vpop.f32.mrb[0].mxu0
  %v239 = vadd.f32 %v169, %v238
  %v240 = vpop.f32.mrb[0].mxu0
  %241 = vdwg.mxu0
  %242 = vmatprep.subr.mxu0 0.0
  %243 = vmatpush1.msra.mxu0 %v85
  %244 = vmatprep.subr.mxu0 0.0
  %245 = vmatpush1.msra.mxu0 %v86
  %246 = vmatprep.subr.mxu0 0.0
  %247 = vmatpush1.msra.mxu0 %v87
  %248 = vmatprep.subr.mxu0 0.0
  %249 = vmatpush1.msra.mxu0 %v88
  %250 = vmatprep.subr.mxu0 0.0
  %251 = vmatpush1.msra.mxu0 %v89
  %252 = vmatprep.subr.mxu0 0.0
  %253 = vmatpush1.msra.mxu0 %v90
  %254 = vmatprep.subr.mxu0 0.0
  %255 = vmatpush1.msra.mxu0 0.0
  %256 = vmatprep.subr.mxu0 0.0
  %257 = vmatpush1.msra.mxu0 0.0
  %258 = vmatprep.subr.mxu0 0.0
  %259 = vmatpush1.msra.mxu0 0.0
  %260 = vmatprep.subr.mxu0 0.0
  %261 = vmatpush1.msra.mxu0 0.0
  %262 = vmatprep.subr.mxu0 0.0
  %263 = vmatpush1.msra.mxu0 0.0
  %264 = vmatprep.subr.mxu0 0.0
  %265 = vmatpush1.msra.mxu0 0.0
  %266 = vmatprep.subr.mxu0 0.0
  %267 = vmatpush1.msra.mxu0 0.0
  %268 = vmatprep.subr.mxu0 0.0
  %269 = vmatpush1.msra.mxu0 0.0
  %270 = vmatprep.subr.mxu0 0.0
  %271 = vmatpush1.msra.mxu0 0.0
  %272 = vmatprep.subr.mxu0 0.0
  %273 = vmatpush1.msra.mxu0 0.0
  %274 = vmatprep.subr.mxu0 0.0
  %275 = vmatpush1.msra.mxu0 0.0
  %276 = vmatprep.subr.mxu0 0.0
  %277 = vmatpush1.msra.mxu0 0.0
  %278 = vmatprep.subr.mxu0 0.0
  %279 = vmatpush1.msra.mxu0 0.0
  %280 = vmatprep.subr.mxu0 0.0
  %281 = vmatpush1.msra.mxu0 0.0
  %282 = vmatprep.subr.mxu0 0.0
  %283 = vmatpush1.msra.mxu0 0.0
  %284 = vmatprep.subr.mxu0 0.0
  %285 = vmatpush1.msra.mxu0 0.0
  %286 = vmatprep.subr.mxu0 0.0
  %287 = vmatpush1.msra.mxu0 0.0
  %288 = vmatprep.subr.mxu0 0.0
  %289 = vmatpush1.msra.mxu0 0.0
  %290 = vmatprep.subr.mxu0 0.0
  %291 = vmatpush1.msra.mxu0 0.0
  %292 = vmatprep.subr.mxu0 0.0
  %293 = vmatpush1.msra.mxu0 0.0
  %294 = vmatprep.subr.mxu0 0.0
  %295 = vmatpush1.msra.mxu0 0.0
  %296 = vmatprep.subr.mxu0 0.0
  %297 = vmatpush1.msra.mxu0 0.0
  %298 = vmatprep.subr.mxu0 0.0
  %299 = vmatpush1.msra.mxu0 0.0
  %300 = vmatprep.subr.mxu0 0.0
  %301 = vmatpush1.msra.mxu0 0.0
  %302 = vmatprep.subr.mxu0 0.0
  %303 = vmatpush1.msra.mxu0 0.0
  %304 = vmatprep.subr.mxu0 0.0
  %305 = vmatpush1.msra.mxu0 0.0
  %306 = vmatprep.mubr.f32.mxu0 0.0
  %307 = vmatmul.mubr.f32.gmra.mrb[0].mxu0 %v100
  %v308 = vpop.f32.mrb[0].mxu0
  %v309 = vadd.f32 %v239, %v308
  %v310 = vpop.f32.mrb[0].mxu0
  %311 = vdwg.mxu0
  %vm312 = vcmp.gt.f32.partialorder %v309, 0.0
  %v313 = vmin.f32 %v309, 0.0
  %v314 = vmul.f32 %v313, 1.442695
  %v315 = vpow.pop %v314
  %v316 = vsub.f32 %v315, 1.0
  %v317 = vsel %vm312, %v309, %v316
  %318 = vst [vmem:[%s3] sm:$0xff] %v317
  %v319 = vlaneseq
  %v320 = vshrl.u32 %v319, 7
  %v321 = vlaneseq
  %v322 = vand.u32 %v321, 127
  %v323 = vshra.s32 %v322, 4
  %s324 = smul.u32 0, 8
  %v325 = vstv %s324
  %v326 = vadd.s32 %v325, %v320
  %v327 = vmul.u32 %v326, 8
  %v328 = vadd.s32 %v327, %v323
  %vm329 = vcmp.lt.s32.totalorder %v328, 8
  %v330 = vsel %vm329, %v317, 0.0
  %v331 = vadd.f32 %v330, 0.0
  %332 = vst [vmem:[%s4] sm:$0xff] %v331
  %v333 = vmul.f32 %v330, %v330
  %v334 = vadd.f32 %v333, 0.0
  %335 = vst [vmem:[%s4 + $0x8] sm:$0xff] %v334
  // Predicated region
  $region14: #{mlp_forward.3} parent=0 // pred_check
    _
  $region15: #{mlp_forward.3} parent=0 // pred_check_branch
    %337 = sbr.rel (0) target = $region17
  $region16: #{mlp_forward.3} parent=0 // pred_region
    _
  $region17: #{mlp_forward.3} parent=0 // pred_fallthru
    _
  // Predicated region
  $region18: #{mlp_forward.3} parent=0 // pred_check
    _
  $region19: #{mlp_forward.3} parent=0 // pred_check_branch
    %339 = sbr.rel (0) target = $region21
  $region20: #{mlp_forward.3} parent=0 // pred_region
    _
  $region21: #{mlp_forward.3} parent=0 // pred_fallthru
    _
  // Predicated region
  $region22: #{mlp_forward.3} parent=0 // pred_check
    _
  $region23: #{mlp_forward.3} parent=0 // pred_check_branch
    %341 = sbr.rel (0) target = $region25
  $region24: #{mlp_forward.3} parent=0 // pred_region
    _
  $region25: #{mlp_forward.3} parent=0 // pred_fallthru
    _
  // Predicated region
  $region26: #{mlp_forward.3} parent=0 // pred_check
    _
  $region27: #{mlp_forward.3} parent=0 // pred_check_branch
    %343 = sbr.rel (0) target = $region29
  $region28: #{mlp_forward.3} parent=0 // pred_region
    _
  $region29: #{mlp_forward.3} parent=0 // pred_fallthru
    _

// kernel: mlp_forward.4
$region0: #{mlp_forward.4}
  #allocation0 [shape = 'u32[]', space=smem, size = 0x4, offset = 0x4, fixed_abs, tag = 'smem constant byte address 0x4 - core index']
  #allocation1 [shape = 'u32[144,128]{1,0:T(1,128)}', space=vmem, size = 0x12000, scoped, tag = 'internal scratch']
  %s0 = inlined_call_operand.vmem [shape: f32[8,128], index: 0, kind: input, shape index: {}]
  %s1 = inlined_call_operand.vmem [shape: f32[128,128], index: 1, kind: input, shape index: {}]
  %s2 = inlined_call_operand.vmem [shape: f32[1,128], index: 2, kind: input, shape index: {}]
  %s3 = inlined_call_operand.vmem [shape: f32[8,128], index: 3, kind: output, shape index: {0}]
  %s4 = inlined_call_operand.vmem [shape: f32[16,128], index: 4, kind: output, shape index: {1}]
  %5 = xla_tuple %s3, %s4
  %s6 = sld [smem:[#allocation0]]
  $region30: #{mlp_forward.4} parent=0
    _
  %s8 = ssub.s32 1, %s6
  %s9 = scalar_select 0, %s8, %s6
  // Predicated region
  $region2: #{mlp_forward.4} parent=0 // pred_check
    _
  $region3: #{mlp_forward.4} parent=0 // pred_check_branch
    %11 = sbr.rel (0) target = $region5
  $region4: #{mlp_forward.4} parent=0 // pred_region
    _
  $region5: #{mlp_forward.4} parent=0 // pred_fallthru
    _
  // Predicated region
  $region6: #{mlp_forward.4} parent=0 // pred_check
    _
  $region7: #{mlp_forward.4} parent=0 // pred_check_branch
    %13 = sbr.rel (0) target = $region9
  $region8: #{mlp_forward.4} parent=0 // pred_region
    _
  $region9: #{mlp_forward.4} parent=0 // pred_fallthru
    _
  // Predicated region
  $region10: #{mlp_forward.4} parent=0 // pred_check
    _
  $region11: #{mlp_forward.4} parent=0 // pred_check_branch
    %15 = sbr.rel (0) target = $region13
  $region12: #{mlp_forward.4} parent=0 // pred_region
    _
  $region13: #{mlp_forward.4} parent=0 // pred_fallthru
    _
  %v16 = vld [vmem:[%s0] sm:$0xff]
  %v17 = vld [vmem:[%s1] sm:$0xff]
  %v18 = vld [vmem:[%s1 + $0x8] sm:$0xff]
  %v19 = vld [vmem:[%s1 + $0x10] sm:$0xff]
  %v20 = vld [vmem:[%s1 + $0x18] sm:$0xff]
  %v21 = vld [vmem:[%s1 + $0x20] sm:$0xff]
  %v22 = vld [vmem:[%s1 + $0x28] sm:$0xff]
  %v23 = vld [vmem:[%s1 + $0x30] sm:$0xff]
  %v24 = vld [vmem:[%s1 + $0x38] sm:$0xff]
  %v25 = vld [vmem:[%s1 + $0x40] sm:$0xff]
  %v26 = vld [vmem:[%s1 + $0x48] sm:$0xff]
  %v27 = vld [vmem:[%s1 + $0x50] sm:$0xff]
  %v28 = vld [vmem:[%s1 + $0x58] sm:$0xff]
  %v29 = vld [vmem:[%s1 + $0x60] sm:$0xff]
  %v30 = vld [vmem:[%s1 + $0x68] sm:$0xff]
  %v31 = vld [vmem:[%s1 + $0x70] sm:$0xff]
  %v32 = vld [vmem:[%s1 + $0x78] sm:$0xff]
  %v33 = vld [vmem:[%s2] sm:$0x1]
  %v35 = vlaneseq
  %v36 = vshrl.u32 %v35, 7
  %v37 = vsub.s32 0, %v36
  %v38 = vrot.slane %v33, %v37
  %40 = vmatprep.subr.mxu0 0.0
  %41 = vmatpush1.msra.mxu0 %v17
  %42 = vmatprep.subr.mxu0 0.0
  %43 = vmatpush1.msra.mxu0 %v18
  %44 = vmatprep.subr.mxu0 0.0
  %45 = vmatpush1.msra.mxu0 %v19
  %46 = vmatprep.subr.mxu0 0.0
  %47 = vmatpush1.msra.mxu0 %v20
  %48 = vmatprep.subr.mxu0 0.0
  %49 = vmatpush1.msra.mxu0 %v21
  %50 = vmatprep.subr.mxu0 0.0
  %51 = vmatpush1.msra.mxu0 %v22
  %52 = vmatprep.subr.mxu0 0.0
  %53 = vmatpush1.msra.mxu0 %v23
  %54 = vmatprep.subr.mxu0 0.0
  %55 = vmatpush1.msra.mxu0 %v24
  %56 = vmatprep.subr.mxu0 0.0
  %57 = vmatpush1.msra.mxu0 %v25
  %58 = vmatprep.subr.mxu0 0.0
  %59 = vmatpush1.msra.mxu0 %v26
  %60 = vmatprep.subr.mxu0 0.0
  %61 = vmatpush1.msra.mxu0 %v27
  %62 = vmatprep.subr.mxu0 0.0
  %63 = vmatpush1.msra.mxu0 %v28
  %64 = vmatprep.subr.mxu0 0.0
  %65 = vmatpush1.msra.mxu0 %v29
  %66 = vmatprep.subr.mxu0 0.0
  %67 = vmatpush1.msra.mxu0 %v30
  %68 = vmatprep.subr.mxu0 0.0
  %69 = vmatpush1.msra.mxu0 %v31
  %70 = vmatprep.subr.mxu0 0.0
  %71 = vmatpush1.msra.mxu0 %v32
  %72 = vmatprep.subr.mxu0 0.0
  %73 = vmatpush1.msra.mxu0 0.0
  %74 = vmatprep.subr.mxu0 0.0
  %75 = vmatpush1.msra.mxu0 0.0
  %76 = vmatprep.subr.mxu0 0.0
  %77 = vmatpush1.msra.mxu0 0.0
  %78 = vmatprep.subr.mxu0 0.0
  %79 = vmatpush1.msra.mxu0 0.0
  %80 = vmatprep.subr.mxu0 0.0
  %81 = vmatpush1.msra.mxu0 0.0
  %82 = vmatprep.subr.mxu0 0.0
  %83 = vmatpush1.msra.mxu0 0.0
  %84 = vmatprep.subr.mxu0 0.0
  %85 = vmatpush1.msra.mxu0 0.0
  %86 = vmatprep.subr.mxu0 0.0
  %87 = vmatpush1.msra.mxu0 0.0
  %88 = vmatprep.subr.mxu0 0.0
  %89 = vmatpush1.msra.mxu0 0.0
  %90 = vmatprep.subr.mxu0 0.0
  %91 = vmatpush1.msra.mxu0 0.0
  %92 = vmatprep.subr.mxu0 0.0
  %93 = vmatpush1.msra.mxu0 0.0
  %94 = vmatprep.subr.mxu0 0.0
  %95 = vmatpush1.msra.mxu0 0.0
  %96 = vmatprep.subr.mxu0 0.0
  %97 = vmatpush1.msra.mxu0 0.0
  %98 = vmatprep.subr.mxu0 0.0
  %99 = vmatpush1.msra.mxu0 0.0
  %100 = vmatprep.subr.mxu0 0.0
  %101 = vmatpush1.msra.mxu0 0.0
  %102 = vmatprep.subr.mxu0 0.0
  %103 = vmatpush1.msra.mxu0 0.0
  %104 = vmatprep.mubr.f32.mxu0 0.0
  %105 = vmatmul.mubr.f32.gmra.mrb[0].mxu0 %v16
  %v106 = vpop.f32.mrb[0].mxu0
  %v107 = vadd.f32 %v38, %v106
  %v108 = vpop.f32.mrb[0].mxu0
  %109 = vdwg.mxu0
  %vm110 = vcmp.gt.f32.partialorder %v107, 0.0
  %v111 = vmin.f32 %v107, 0.0
  %v112 = vmul.f32 %v111, 1.442695
  %v113 = vpow.pop %v112
  %v114 = vsub.f32 %v113, 1.0
  %v115 = vsel %vm110, %v107, %v114
  %116 = vst [vmem:[%s3] sm:$0xff] %v115
  %v117 = vlaneseq
  %v118 = vshrl.u32 %v117, 7
  %v119 = vlaneseq
  %v120 = vand.u32 %v119, 127
  %v121 = vshra.s32 %v120, 4
  %s122 = smul.u32 0, 8
  %v123 = vstv %s122
  %v124 = vadd.s32 %v123, %v118
  %v125 = vmul.u32 %v124, 8
  %v126 = vadd.s32 %v125, %v121
  %vm127 = vcmp.lt.s32.totalorder %v126, 8
  %v128 = vsel %vm127, %v115, 0.0
  %v129 = vadd.f32 %v128, 0.0
  %130 = vst [vmem:[%s4] sm:$0xff] %v129
  %v131 = vmul.f32 %v128, %v128
  %v132 = vadd.f32 %v131, 0.0
  %133 = vst [vmem:[%s4 + $0x8] sm:$0xff] %v132
  // Predicated region
  $region14: #{mlp_forward.4} parent=0 // pred_check
    _
  $region15: #{mlp_forward.4} parent=0 // pred_check_branch
    %135 = sbr.rel (0) target = $region17
  $region16: #{mlp_forward.4} parent=0 // pred_region
    _
  $region17: #{mlp_forward.4} parent=0 // pred_fallthru
    _
  // Predicated region
  $region18: #{mlp_forward.4} parent=0 // pred_check
    _
  $region19: #{mlp_forward.4} parent=0 // pred_check_branch
    %137 = sbr.rel (0) target = $region21
  $region20: #{mlp_forward.4} parent=0 // pred_region
    _
  $region21: #{mlp_forward.4} parent=0 // pred_fallthru
    _
  // Predicated region
  $region22: #{mlp_forward.4} parent=0 // pred_check
    _
  $region23: #{mlp_forward.4} parent=0 // pred_check_branch
    %139 = sbr.rel (0) target = $region25
  $region24: #{mlp_forward.4} parent=0 // pred_region
    _
  $region25: #{mlp_forward.4} parent=0 // pred_fallthru
    _
  // Predicated region
  $region26: #{mlp_forward.4} parent=0 // pred_check
    _
  $region27: #{mlp_forward.4} parent=0 // pred_check_branch
    %141 = sbr.rel (0) target = $region29
  $region28: #{mlp_forward.4} parent=0 // pred_region
    _
  $region29: #{mlp_forward.4} parent=0 // pred_fallthru
    _

// kernel: mlp_forward.5
$region0: #{mlp_forward.5}
  #allocation0 [shape = 'u32[]', space=smem, size = 0x4, offset = 0x4, fixed_abs, tag = 'smem constant byte address 0x4 - core index']
  #allocation1 [shape = 'u32[144,128]{1,0:T(1,128)}', space=vmem, size = 0x12000, scoped, tag = 'internal scratch']
  %s0 = inlined_call_operand.vmem [shape: f32[8,128], index: 0, kind: input, shape index: {}]
  %s1 = inlined_call_operand.vmem [shape: f32[128,128], index: 1, kind: input, shape index: {}]
  %s2 = inlined_call_operand.vmem [shape: f32[1,128], index: 2, kind: input, shape index: {}]
  %s3 = inlined_call_operand.vmem [shape: f32[8,128], index: 3, kind: output, shape index: {}]
  %s4 = sld [smem:[#allocation0]]
  $region22: #{mlp_forward.5} parent=0
    _
  %s6 = ssub.s32 1, %s4
  %s7 = scalar_select 0, %s6, %s4
  // Predicated region
  $region2: #{mlp_forward.5} parent=0 // pred_check
    _
  $region3: #{mlp_forward.5} parent=0 // pred_check_branch
    %9 = sbr.rel (0) target = $region5
  $region4: #{mlp_forward.5} parent=0 // pred_region
    _
  $region5: #{mlp_forward.5} parent=0 // pred_fallthru
    _
  // Predicated region
  $region6: #{mlp_forward.5} parent=0 // pred_check
    _
  $region7: #{mlp_forward.5} parent=0 // pred_check_branch
    %11 = sbr.rel (0) target = $region9
  $region8: #{mlp_forward.5} parent=0 // pred_region
    _
  $region9: #{mlp_forward.5} parent=0 // pred_fallthru
    _
  // Predicated region
  $region10: #{mlp_forward.5} parent=0 // pred_check
    _
  $region11: #{mlp_forward.5} parent=0 // pred_check_branch
    %13 = sbr.rel (0) target = $region13
  $region12: #{mlp_forward.5} parent=0 // pred_region
    _
  $region13: #{mlp_forward.5} parent=0 // pred_fallthru
    _
  %v14 = vld [vmem:[%s0] sm:$0xff]
  %v15 = vld [vmem:[%s1] sm:$0xff]
  %v16 = vld [vmem:[%s1 + $0x8] sm:$0xff]
  %v17 = vld [vmem:[%s1 + $0x10] sm:$0xff]
  %v18 = vld [vmem:[%s1 + $0x18] sm:$0xff]
  %v19 = vld [vmem:[%s1 + $0x20] sm:$0xff]
  %v20 = vld [vmem:[%s1 + $0x28] sm:$0xff]
  %v21 = vld [vmem:[%s1 + $0x30] sm:$0xff]
  %v22 = vld [vmem:[%s1 + $0x38] sm:$0xff]
  %v23 = vld [vmem:[%s1 + $0x40] sm:$0xff]
  %v24 = vld [vmem:[%s1 + $0x48] sm:$0xff]
  %v25 = vld [vmem:[%s1 + $0x50] sm:$0xff]
  %v26 = vld [vmem:[%s1 + $0x58] sm:$0xff]
  %v27 = vld [vmem:[%s1 + $0x60] sm:$0xff]
  %v28 = vld [vmem:[%s1 + $0x68] sm:$0xff]
  %v29 = vld [vmem:[%s1 + $0x70] sm:$0xff]
  %v30 = vld [vmem:[%s1 + $0x78] sm:$0xff]
  %v31 = vld [vmem:[%s2] sm:$0x1]
  %v33 = vlaneseq
  %v34 = vshrl.u32 %v33, 7
  %v35 = vsub.s32 0, %v34
  %v36 = vrot.slane %v31, %v35
  %38 = vmatprep.subr.mxu0 0.0
  %39 = vmatpush1.msra.mxu0 %v15
  %40 = vmatprep.subr.mxu0 0.0
  %41 = vmatpush1.msra.mxu0 %v16
  %42 = vmatprep.subr.mxu0 0.0
  %43 = vmatpush1.msra.mxu0 %v17
  %44 = vmatprep.subr.mxu0 0.0
  %45 = vmatpush1.msra.mxu0 %v18
  %46 = vmatprep.subr.mxu0 0.0
  %47 = vmatpush1.msra.mxu0 %v19
  %48 = vmatprep.subr.mxu0 0.0
  %49 = vmatpush1.msra.mxu0 %v20
  %50 = vmatprep.subr.mxu0 0.0
  %51 = vmatpush1.msra.mxu0 %v21
  %52 = vmatprep.subr.mxu0 0.0
  %53 = vmatpush1.msra.mxu0 %v22
  %54 = vmatprep.subr.mxu0 0.0
  %55 = vmatpush1.msra.mxu0 %v23
  %56 = vmatprep.subr.mxu0 0.0
  %57 = vmatpush1.msra.mxu0 %v24
  %58 = vmatprep.subr.mxu0 0.0
  %59 = vmatpush1.msra.mxu0 %v25
  %60 = vmatprep.subr.mxu0 0.0
  %61 = vmatpush1.msra.mxu0 %v26
  %62 = vmatprep.subr.mxu0 0.0
  %63 = vmatpush1.msra.mxu0 %v27
  %64 = vmatprep.subr.mxu0 0.0
  %65 = vmatpush1.msra.mxu0 %v28
  %66 = vmatprep.subr.mxu0 0.0
  %67 = vmatpush1.msra.mxu0 %v29
  %68 = vmatprep.subr.mxu0 0.0
  %69 = vmatpush1.msra.mxu0 %v30
  %70 = vmatprep.subr.mxu0 0.0
  %71 = vmatpush1.msra.mxu0 0.0
  %72 = vmatprep.subr.mxu0 0.0
  %73 = vmatpush1.msra.mxu0 0.0
  %74 = vmatprep.subr.mxu0 0.0
  %75 = vmatpush1.msra.mxu0 0.0
  %76 = vmatprep.subr.mxu0 0.0
  %77 = vmatpush1.msra.mxu0 0.0
  %78 = vmatprep.subr.mxu0 0.0
  %79 = vmatpush1.msra.mxu0 0.0
  %80 = vmatprep.subr.mxu0 0.0
  %81 = vmatpush1.msra.mxu0 0.0
  %82 = vmatprep.subr.mxu0 0.0
  %83 = vmatpush1.msra.mxu0 0.0
  %84 = vmatprep.subr.mxu0 0.0
  %85 = vmatpush1.msra.mxu0 0.0
  %86 = vmatprep.subr.mxu0 0.0
  %87 = vmatpush1.msra.mxu0 0.0
  %88 = vmatprep.subr.mxu0 0.0
  %89 = vmatpush1.msra.mxu0 0.0
  %90 = vmatprep.subr.mxu0 0.0
  %91 = vmatpush1.msra.mxu0 0.0
  %92 = vmatprep.subr.mxu0 0.0
  %93 = vmatpush1.msra.mxu0 0.0
  %94 = vmatprep.subr.mxu0 0.0
  %95 = vmatpush1.msra.mxu0 0.0
  %96 = vmatprep.subr.mxu0 0.0
  %97 = vmatpush1.msra.mxu0 0.0
  %98 = vmatprep.subr.mxu0 0.0
  %99 = vmatpush1.msra.mxu0 0.0
  %100 = vmatprep.subr.mxu0 0.0
  %101 = vmatpush1.msra.mxu0 0.0
  %102 = vmatprep.mubr.f32.mxu0 0.0
  %103 = vmatmul.mubr.f32.gmra.mrb[0].mxu0 %v14
  %v104 = vpop.f32.mrb[0].mxu0
  %v105 = vadd.f32 %v36, %v104
  %v106 = vpop.f32.mrb[0].mxu0
  %107 = vdwg.mxu0
  %108 = vst [vmem:[%s3] sm:$0xff] %v105
  // Predicated region
  $region14: #{mlp_forward.5} parent=0 // pred_check
    _
  $region15: #{mlp_forward.5} parent=0 // pred_check_branch
    %110 = sbr.rel (0) target = $region17
  $region16: #{mlp_forward.5} parent=0 // pred_region
    _
  $region17: #{mlp_forward.5} parent=0 // pred_fallthru
    _
  // Predicated region
  $region18: #{mlp_forward.5} parent=0 // pred_check
    _
  $region19: #{mlp_forward.5} parent=0 // pred_check_branch
    %112 = sbr.rel (0) target = $region21
  $region20: #{mlp_forward.5} parent=0 // pred_region
    _
  $region21: #{mlp_forward.5} parent=0 // pred_fallthru
    _

</llo_original>
